<compile_context>
chip_gen: v5e
topology: v5e:2x2
jax: 0.10.0
libtpu: 0.0.40
codegen_flags: <defaults>
</compile_context>

<pallas_src>
import jax
import jax.numpy as jnp
from jax.experimental import pallas as pl
from jax.experimental.pallas import tpu as pltpu

BN_EPS = 1e-5
_LANE = 128
_FUSED_MAX_WEIGHT_BYTES = 4 * 1024 * 1024  # above this, stream weight tiles instead of fusing


def _vmem_capacity_bytes():
    """Generation-aware VMEM capacity; conservative (v7x per-TC) fallback."""
    try:
        cap = int(pltpu.get_tpu_info().vmem_capacity_bytes)
        if cap > 0:
            return cap
    except Exception:
        pass
    return 64 * 1024 * 1024


def _bn_prelu(h, b, g, be, a):
    """Bias add -> training-mode BatchNorm1d (biased batch stats) -> PReLU (scalar slope)."""
    h = h + b
    mean = jnp.mean(h, axis=0, keepdims=True)
    cen = h - mean
    var = jnp.mean(cen * cen, axis=0, keepdims=True)       # two-pass: no cancellation
    scale = g * jax.lax.rsqrt(var + BN_EPS)
    h = cen * scale + be
    return jnp.maximum(h, 0.0) + a * jnp.minimum(h, 0.0)    # PReLU


# ------------------------------------------------------------------ kernels
def _fused_kernel(x_ref, w1_ref, w2_ref, bn_ref, o_ref):
    """Whole block in one kernel (small D: everything resident, no padding)."""
    x = x_ref[...]                                   # (N, D) f32, reused for the residual
    bnp = bn_ref[...]                                # (8, D): b1,g1,be1,b2,g2,be2,a1,a2
    h = jnp.dot(x.astype(jnp.bfloat16), w1_ref[...], preferred_element_type=jnp.float32)
    h = _bn_prelu(h, bnp[0:1], bnp[1:2], bnp[2:3], bnp[6:7])
    h = jnp.dot(h.astype(jnp.bfloat16), w2_ref[...], preferred_element_type=jnp.float32)
    h = _bn_prelu(h, bnp[3:4], bnp[4:5], bnp[5:6], bnp[7:8])
    o_ref[...] = x + h


def _stage1_kernel(x_ref, w_ref, bn_ref, h_ref):
    """Gridded stage 1: one (N, tn) output-feature tile of Linear1 + BN1 + PReLU1."""
    h = jnp.dot(x_ref[...].astype(jnp.bfloat16), w_ref[...],
                preferred_element_type=jnp.float32)
    bnp = bn_ref[...]
    h = _bn_prelu(h, bnp[0:1], bnp[1:2], bnp[2:3], bnp[6:7])
    h_ref[...] = h.astype(h_ref.dtype)               # bf16: it is matmul-2's operand anyway


def _stage2_kernel(h_ref, w_ref, bn_ref, x_ref, o_ref):
    """Gridded stage 2: Linear2 + BN2 + PReLU2 + residual for one output-feature tile."""
    g = jnp.dot(h_ref[...], w_ref[...], preferred_element_type=jnp.float32)
    bnp = bn_ref[...]
    g = _bn_prelu(g, bnp[3:4], bnp[4:5], bnp[5:6], bnp[7:8])
    o_ref[...] = x_ref[...] + g


# ------------------------------------------------------------------ parameter packing (hoisted)
def pack_params(params, *, force_grid=None):
    """One-time parameter packing; call once and reuse the result across forward calls.

    Weights are pre-transposed to (in, out), optionally zero-padded to a tile multiple, and cast
    to bf16 for the MXU. The six (D,) BN vectors plus the two PReLU slopes (broadcast) are packed
    into a single (8, Dp) f32 array (one VMEM tile / one DMA). Padded columns stay exactly 0
    through the block (zero weights / biases / gammas).
    """
    D = jnp.asarray(params["w1"]).shape[0]

    if force_grid is None:
        use_grid = 2 * D * D * 2 > _FUSED_MAX_WEIGHT_BYTES
    else:
        use_grid = bool(force_grid)

    if use_grid:
        tn = 256 if D >= 512 else _LANE              # 256-wide MXU on v6e/v7x; 128 on v5e
        Dp = ((D + tn - 1) // tn) * tn
    else:
        tn = None
        Dp = D

    def pack_w(w):
        wt = jnp.asarray(w, jnp.float32).T           # torch (out, in) -> (in, out)
        if Dp != D:
            wt = jnp.pad(wt, ((0, Dp - D), (0, Dp - D)))
        return wt.astype(jnp.bfloat16)

    def pack_v(v):
        v = jnp.asarray(v, jnp.float32)
        return jnp.pad(v, (0, Dp - D)) if Dp != D else v

    a1 = jnp.asarray(params["a1"], jnp.float32)
    a2 = jnp.asarray(params["a2"], jnp.float32)
    bn_pack = jnp.stack(
        [pack_v(params["b1"]), pack_v(params["g1"]), pack_v(params["be1"]),
         pack_v(params["b2"]), pack_v(params["g2"]), pack_v(params["be2"]),
         jnp.ones((Dp,), jnp.float32) * a1, jnp.ones((Dp,), jnp.float32) * a2],
        axis=0)                                      # (8, Dp)

    return {"w1t": pack_w(params["w1"]), "w2t": pack_w(params["w2"]), "bn": bn_pack,
            "dim": int(D), "dim_pad": int(Dp), "tile_n": tn, "use_grid": use_grid}


# ------------------------------------------------------------------ wrappers
def _fused_call(x, packed):
    N, D = x.shape
    cap = _vmem_capacity_bytes()
    est = (2 * D * D * 2          # w1, w2 (bf16)
           + 2 * N * D * 4        # x in + out (f32)
           + N * D * 4            # f32 h intermediate
           + 2 * N * D * 2        # bf16 casts of x and h
           + 8 * D * 4)           # packed BN/PReLU params
    assert est < int(0.8 * cap), (
        "fused ResnetBlock does not fit VMEM; repack with pack_params(force_grid=True)")
    vmem_limit = int(min(max(2 * est, 16 << 20), int(0.9 * cap)))

    vmem = pl.BlockSpec(memory_space=pltpu.MemorySpace.VMEM)
    return pl.pallas_call(
        _fused_kernel,
        out_shape=jax.ShapeDtypeStruct((N, D), jnp.float32),
        in_specs=[vmem, vmem, vmem, vmem],
        out_specs=vmem,
        compiler_params=pltpu.CompilerParams(vmem_limit_bytes=vmem_limit),
        cost_estimate=pl.CostEstimate(
            flops=int(4 * N * D * D),
            transcendentals=int(2 * D),
            bytes_accessed=int(2 * D * D * 2 + 2 * N * D * 4 + 8 * D * 4)),
    )(x, packed["w1t"], packed["w2t"], packed["bn"])


def _gridded_call(x, packed):
    N, D = x.shape
    Dp, tn = packed["dim_pad"], packed["tile_n"]
    n_tiles = Dp // tn
    x_pad = jnp.pad(x, ((0, 0), (0, Dp - D))) if Dp != D else x

    cap = _vmem_capacity_bytes()
    est1 = (2 * N * Dp * 4 + 2 * Dp * tn * 2 + 2 * 8 * tn * 4
            + 2 * N * tn * 2 + N * tn * 4 + N * Dp * 2)
    est2 = (2 * N * Dp * 2 + 2 * Dp * tn * 2 + 2 * 8 * tn * 4
            + 2 * N * tn * 4 + 2 * N * tn * 4 + N * tn * 4)
    est = max(est1, est2)
    assert est < int(0.8 * cap), (
        "gridded ResnetBlock tile footprint exceeds VMEM; reduce tile_n or the batch")
    # TODO(synk): also tile over the batch axis (two stats passes) if N*Dp itself outgrows VMEM.
    vmem_limit = int(min(max(2 * est, 16 << 20), int(0.9 * cap)))

    cparams = pltpu.CompilerParams(
        dimension_semantics=("parallel",),           # shards feature tiles across v7x's 2 TCs
        vmem_limit_bytes=vmem_limit)

    # Stage 1: h = PReLU1(BN1(x @ W1^T + b1)), streaming W1 output-feature column tiles.
    h = pl.pallas_call(
        _stage1_kernel,
        out_shape=jax.ShapeDtypeStruct((N, Dp), jnp.bfloat16),
        grid_spec=pltpu.PrefetchScalarGridSpec(
            num_scalar_prefetch=0, grid=(n_tiles,),
            in_specs=[pl.BlockSpec((N, Dp), lambda i: (0, 0)),    # x resident
                      pl.BlockSpec((Dp, tn), lambda i: (0, i)),   # W1 column tile
                      pl.BlockSpec((8, tn), lambda i: (0, i))],   # packed BN/PReLU tile
            out_specs=pl.BlockSpec((N, tn), lambda i: (0, i))),
        compiler_params=cparams,
        cost_estimate=pl.CostEstimate(
            flops=int(2 * N * Dp * Dp), transcendentals=int(Dp),
            bytes_accessed=int(Dp * Dp * 2 + N * Dp * 4 + N * Dp * 2 + 8 * Dp * 4)),
    )(x_pad, packed["w1t"], packed["bn"])

    # Stage 2: out = x + PReLU2(BN2(h @ W2^T + b2)), same streaming over W2 column tiles.
    out = pl.pallas_call(
        _stage2_kernel,
        out_shape=jax.ShapeDtypeStruct((N, Dp), jnp.float32),
        grid_spec=pltpu.PrefetchScalarGridSpec(
            num_scalar_prefetch=0, grid=(n_tiles,),
            in_specs=[pl.BlockSpec((N, Dp), lambda i: (0, 0)),    # h resident (bf16)
                      pl.BlockSpec((Dp, tn), lambda i: (0, i)),   # W2 column tile
                      pl.BlockSpec((8, tn), lambda i: (0, i)),    # packed BN/PReLU tile
                      pl.BlockSpec((N, tn), lambda i: (0, i))],   # x tile for the residual
            out_specs=pl.BlockSpec((N, tn), lambda i: (0, i))),
        compiler_params=cparams,
        cost_estimate=pl.CostEstimate(
            flops=int(2 * N * Dp * Dp), transcendentals=int(Dp),
            bytes_accessed=int(Dp * Dp * 2 + N * Dp * 2 + 2 * N * Dp * 4 + 8 * Dp * 4)),
    )(h, packed["w2t"], packed["bn"], x_pad)

    return out[:, :D] if Dp != D else out


def resnet_block(x, packed):
    """x: (N, D) float32; packed: output of pack_params (pack once, reuse every call).

    Note: N feeds the MXU rows directly; if the block is applied to many samples, batch them
    into one call (N >= 128/256) for matmul efficiency — at tiny N the kernel is DMA/latency
    bound and the streaming/packing above is what matters.
    """
    x = x.astype(jnp.float32)
    assert x.shape[1] == packed["dim"]
    if packed["use_grid"]:
        return _gridded_call(x, packed)
    return _fused_call(x, packed)


# ------------------------------------------------------------------ pure-JAX references
def _bn_ref(h, g, be):
    m = jnp.mean(h, axis=0, keepdims=True)
    v = jnp.mean((h - m) ** 2, axis=0, keepdims=True)
    return (h - m) / jnp.sqrt(v + BN_EPS) * g + be


def _prelu_ref(h, a):
    return jnp.where(h >= 0, h, a * h)


def reference_f32(x, params):
    """Exact f32 replication of the PyTorch forward (training-mode BN)."""
    h = x @ params["w1"].T + params["b1"]
    h = _prelu_ref(_bn_ref(h, params["g1"], params["be1"]), params["a1"])
    h = h @ params["w2"].T + params["b2"]
    h = _prelu_ref(_bn_ref(h, params["g2"], params["be2"]), params["a2"])
    return x + h


def reference_bf16(x, params):
    """Same math with bf16 matmul operands / f32 accumulation (mirrors the kernel)."""
    def mm(a, w):
        return jnp.dot(a.astype(jnp.bfloat16), w.T.astype(jnp.bfloat16),
                       preferred_element_type=jnp.float32)
    h = mm(x, params["w1"]) + params["b1"]
    h = _prelu_ref(_bn_ref(h, params["g1"], params["be1"]), params["a1"])
    h = mm(h, params["w2"]) + params["b2"]
    h = _prelu_ref(_bn_ref(h, params["g2"], params["be2"]), params["a2"])
    return x + h


def init_params(key, dim):
    """Deterministic init mimicking PyTorch defaults (shapes / PReLU slope 0.25)."""
    ks = jax.random.split(key, 4)
    bound = 1.0 / jnp.sqrt(dim)
    return {
        "w1": jax.random.uniform(ks[0], (dim, dim), jnp.float32, -bound, bound),
        "b1": jax.random.uniform(ks[1], (dim,), jnp.float32, -bound, bound),
        "g1": jnp.ones((dim,), jnp.float32),
        "be1": jnp.zeros((dim,), jnp.float32),
        "a1": jnp.array(0.25, jnp.float32),
        "w2": jax.random.uniform(ks[2], (dim, dim), jnp.float32, -bound, bound),
        "b2": jax.random.uniform(ks[3], (dim,), jnp.float32, -bound, bound),
        "g2": jnp.ones((dim,), jnp.float32),
        "be2": jnp.zeros((dim,), jnp.float32),
        "a2": jnp.array(0.25, jnp.float32),
    }


if __name__ == "__main__":
    key = jax.random.PRNGKey(0)
    k_x, k_p, k_x2, k_p2 = jax.random.split(key, 4)

    # Small demo (use_dropout=False path): batch=8, dim=32 -> fused, unpadded kernel.
    N, D = 8, 32
    x = jax.random.normal(k_x, (N, D), dtype=jnp.float32)
    params = init_params(k_p, D)
    packed = pack_params(params)                       # hoisted one-time packing
    out = jax.block_until_ready(resnet_block(x, packed))
    assert out.shape == (N, D)

    ref_b = reference_bf16(x, params)                  # same algorithm (bf16 MXU operands)
    assert jnp.allclose(out, ref_b, atol=2e-2, rtol=2e-2), "mismatch vs bf16-operand reference"
    ref_f = reference_f32(x, params)                   # loose check vs exact f32 PyTorch math
    assert jnp.allclose(out, ref_f, atol=3e-1, rtol=3e-1), "mismatch vs f32 reference"

    # Also exercise the gridded / streamed-weights path (feature-tile grid of 3).
    N2, D2 = 16, 384
    x2 = jax.random.normal(k_x2, (N2, D2), dtype=jnp.float32)
    params2 = init_params(k_p2, D2)
    packed2 = pack_params(params2, force_grid=True)
    out2 = jax.block_until_ready(resnet_block(x2, packed2))
    assert out2.shape == (N2, D2)
    ref2 = reference_bf16(x2, params2)
    assert jnp.allclose(out2, ref2, atol=3e-2, rtol=3e-2), "gridded path mismatch vs reference"

    print("KERNEL_OK")
</pallas_src>

<mosaic_0001>
module attributes {stable_mosaic.version = 11 : i64} {
  func.func @_fused_kernel(%arg0: memref<8x32xf32, #tpu.memory_space<vmem>>, %arg1: memref<32x32xbf16, #tpu.memory_space<vmem>>, %arg2: memref<32x32xbf16, #tpu.memory_space<vmem>>, %arg3: memref<8x32xf32, #tpu.memory_space<vmem>>, %arg4: memref<8x32xf32, #tpu.memory_space<vmem>>) attributes {dimension_semantics = [], scalar_prefetch = 0 : i64, scratch_operands = 0 : i64, tpu.core_type = #tpu.core_type<tc>} {
    %c0 = arith.constant 0 : index
    %c0_0 = arith.constant 0 : index
    %0 = vector.load %arg0[%c0, %c0_0] : memref<8x32xf32, #tpu.memory_space<vmem>>, vector<8x32xf32>
    %c0_1 = arith.constant 0 : index
    %c0_2 = arith.constant 0 : index
    %1 = vector.load %arg3[%c0_1, %c0_2] : memref<8x32xf32, #tpu.memory_space<vmem>>, vector<8x32xf32>
    %2 = arith.truncf %0 : vector<8x32xf32> to vector<8x32xbf16>
    %c0_3 = arith.constant 0 : index
    %c0_4 = arith.constant 0 : index
    %3 = vector.load %arg1[%c0_3, %c0_4] : memref<32x32xbf16, #tpu.memory_space<vmem>>, vector<32x32xbf16>
    %cst = arith.constant dense<0.000000e+00> : vector<8x32xf32>
    %4 = tpu.matmul %2, %3, %cst {dimension_numbers = #tpu.dot_dimension_numbers<[1], [0], [0], [1], [0, 0, 1, 1], [], []>} : vector<8x32xbf16>, vector<32x32xbf16>, vector<8x32xf32> -> vector<8x32xf32>
    %5 = vector.extract_strided_slice %1 {offsets = [0, 0], sizes = [1, 32], strides = [1, 1]} : vector<8x32xf32> to vector<1x32xf32>
    %6 = vector.extract_strided_slice %1 {offsets = [1, 0], sizes = [1, 32], strides = [1, 1]} : vector<8x32xf32> to vector<1x32xf32>
    %7 = vector.extract_strided_slice %1 {offsets = [2, 0], sizes = [1, 32], strides = [1, 1]} : vector<8x32xf32> to vector<1x32xf32>
    %8 = vector.extract_strided_slice %1 {offsets = [6, 0], sizes = [1, 32], strides = [1, 1]} : vector<8x32xf32> to vector<1x32xf32>
    %9 = vector.broadcast %5 : vector<1x32xf32> to vector<8x32xf32>
    %10 = arith.addf %4, %9 : vector<8x32xf32>
    %cst_5 = arith.constant dense<0.000000e+00> : vector<32xf32>
    %11 = vector.multi_reduction <add>, %10, %cst_5 [0] : vector<8x32xf32> to vector<32xf32>
    %12 = vector.shape_cast %11 : vector<32xf32> to vector<1x32xf32>
    %cst_6 = arith.constant 8.000000e+00 : f32
    %13 = vector.broadcast %cst_6 : f32 to vector<1x32xf32>
    %14 = arith.divf %12, %13 : vector<1x32xf32>
    %15 = vector.broadcast %14 : vector<1x32xf32> to vector<8x32xf32>
    %16 = arith.subf %10, %15 : vector<8x32xf32>
    %17 = arith.mulf %16, %16 : vector<8x32xf32>
    %cst_7 = arith.constant dense<0.000000e+00> : vector<32xf32>
    %18 = vector.multi_reduction <add>, %17, %cst_7 [0] : vector<8x32xf32> to vector<32xf32>
    %19 = vector.shape_cast %18 : vector<32xf32> to vector<1x32xf32>
    %cst_8 = arith.constant 8.000000e+00 : f32
    %20 = vector.broadcast %cst_8 : f32 to vector<1x32xf32>
    %21 = arith.divf %19, %20 : vector<1x32xf32>
    %cst_9 = arith.constant 9.99999974E-6 : f32
    %22 = vector.broadcast %cst_9 : f32 to vector<1x32xf32>
    %23 = arith.addf %21, %22 : vector<1x32xf32>
    %24 = math.rsqrt %23 : vector<1x32xf32>
    %25 = arith.mulf %6, %24 : vector<1x32xf32>
    %26 = vector.broadcast %25 : vector<1x32xf32> to vector<8x32xf32>
    %27 = arith.mulf %16, %26 : vector<8x32xf32>
    %28 = vector.broadcast %7 : vector<1x32xf32> to vector<8x32xf32>
    %29 = arith.addf %27, %28 : vector<8x32xf32>
    %cst_10 = arith.constant 0.000000e+00 : f32
    %30 = vector.broadcast %cst_10 : f32 to vector<8x32xf32>
    %31 = arith.maximumf %29, %30 : vector<8x32xf32>
    %cst_11 = arith.constant 0.000000e+00 : f32
    %32 = vector.broadcast %cst_11 : f32 to vector<8x32xf32>
    %33 = arith.minimumf %29, %32 : vector<8x32xf32>
    %34 = vector.broadcast %8 : vector<1x32xf32> to vector<8x32xf32>
    %35 = arith.mulf %34, %33 : vector<8x32xf32>
    %36 = arith.addf %31, %35 : vector<8x32xf32>
    %37 = arith.truncf %36 : vector<8x32xf32> to vector<8x32xbf16>
    %c0_12 = arith.constant 0 : index
    %c0_13 = arith.constant 0 : index
    %38 = vector.load %arg2[%c0_12, %c0_13] : memref<32x32xbf16, #tpu.memory_space<vmem>>, vector<32x32xbf16>
    %cst_14 = arith.constant dense<0.000000e+00> : vector<8x32xf32>
    %39 = tpu.matmul %37, %38, %cst_14 {dimension_numbers = #tpu.dot_dimension_numbers<[1], [0], [0], [1], [0, 0, 1, 1], [], []>} : vector<8x32xbf16>, vector<32x32xbf16>, vector<8x32xf32> -> vector<8x32xf32>
    %40 = vector.extract_strided_slice %1 {offsets = [3, 0], sizes = [1, 32], strides = [1, 1]} : vector<8x32xf32> to vector<1x32xf32>
    %41 = vector.extract_strided_slice %1 {offsets = [4, 0], sizes = [1, 32], strides = [1, 1]} : vector<8x32xf32> to vector<1x32xf32>
    %42 = vector.extract_strided_slice %1 {offsets = [5, 0], sizes = [1, 32], strides = [1, 1]} : vector<8x32xf32> to vector<1x32xf32>
    %43 = vector.extract_strided_slice %1 {offsets = [7, 0], sizes = [1, 32], strides = [1, 1]} : vector<8x32xf32> to vector<1x32xf32>
    %44 = vector.broadcast %40 : vector<1x32xf32> to vector<8x32xf32>
    %45 = arith.addf %39, %44 : vector<8x32xf32>
    %cst_15 = arith.constant dense<0.000000e+00> : vector<32xf32>
    %46 = vector.multi_reduction <add>, %45, %cst_15 [0] : vector<8x32xf32> to vector<32xf32>
    %47 = vector.shape_cast %46 : vector<32xf32> to vector<1x32xf32>
    %cst_16 = arith.constant 8.000000e+00 : f32
    %48 = vector.broadcast %cst_16 : f32 to vector<1x32xf32>
    %49 = arith.divf %47, %48 : vector<1x32xf32>
    %50 = vector.broadcast %49 : vector<1x32xf32> to vector<8x32xf32>
    %51 = arith.subf %45, %50 : vector<8x32xf32>
    %52 = arith.mulf %51, %51 : vector<8x32xf32>
    %cst_17 = arith.constant dense<0.000000e+00> : vector<32xf32>
    %53 = vector.multi_reduction <add>, %52, %cst_17 [0] : vector<8x32xf32> to vector<32xf32>
    %54 = vector.shape_cast %53 : vector<32xf32> to vector<1x32xf32>
    %cst_18 = arith.constant 8.000000e+00 : f32
    %55 = vector.broadcast %cst_18 : f32 to vector<1x32xf32>
    %56 = arith.divf %54, %55 : vector<1x32xf32>
    %cst_19 = arith.constant 9.99999974E-6 : f32
    %57 = vector.broadcast %cst_19 : f32 to vector<1x32xf32>
    %58 = arith.addf %56, %57 : vector<1x32xf32>
    %59 = math.rsqrt %58 : vector<1x32xf32>
    %60 = arith.mulf %41, %59 : vector<1x32xf32>
    %61 = vector.broadcast %60 : vector<1x32xf32> to vector<8x32xf32>
    %62 = arith.mulf %51, %61 : vector<8x32xf32>
    %63 = vector.broadcast %42 : vector<1x32xf32> to vector<8x32xf32>
    %64 = arith.addf %62, %63 : vector<8x32xf32>
    %cst_20 = arith.constant 0.000000e+00 : f32
    %65 = vector.broadcast %cst_20 : f32 to vector<8x32xf32>
    %66 = arith.maximumf %64, %65 : vector<8x32xf32>
    %cst_21 = arith.constant 0.000000e+00 : f32
    %67 = vector.broadcast %cst_21 : f32 to vector<8x32xf32>
    %68 = arith.minimumf %64, %67 : vector<8x32xf32>
    %69 = vector.broadcast %43 : vector<1x32xf32> to vector<8x32xf32>
    %70 = arith.mulf %69, %68 : vector<8x32xf32>
    %71 = arith.addf %66, %70 : vector<8x32xf32>
    %72 = arith.addf %0, %71 : vector<8x32xf32>
    %c0_22 = arith.constant 0 : index
    %c0_23 = arith.constant 0 : index
    %73 = vector.load %arg4[%c0_22, %c0_23] : memref<8x32xf32, #tpu.memory_space<vmem>>, vector<8x32xf32>
    tpu.vector_store %arg4[%c0_22, %c0_23], %72 {strides = array<i32>} : memref<8x32xf32, #tpu.memory_space<vmem>>, vector<8x32xf32>,
    return
  }
}

</mosaic_0001>

<llo_original>
// kernel: tpu_custom_call.1
$region0: #{tpu_custom_call.1}
  #allocation0 [shape = 'u32[]', space=smem, size = 0x4, offset = 0x4, fixed_abs, tag = 'smem constant byte address 0x4 - core index']
  #allocation1 [shape = 'u32[72,128]{1,0:T(1,128)}', space=vmem, size = 0x9000, scoped, tag = 'internal scratch']
  %s0 = inlined_call_operand.hbm [shape: f32[8,32], index: 0, kind: input, shape index: {}]
  %s1 = inlined_call_operand.hbm [shape: bf16[32,32], index: 1, kind: input, shape index: {}]
  %s2 = inlined_call_operand.hbm [shape: bf16[32,32], index: 2, kind: input, shape index: {}]
  %s3 = inlined_call_operand.hbm [shape: f32[8,32], index: 3, kind: input, shape index: {}]
  %s4 = inlined_call_operand.hbm [shape: f32[8,32], index: 4, kind: output, shape index: {}]
  %s5 = sld [smem:[#allocation0]]
  $region42: #{tpu_custom_call.1} parent=0
    _
  %s7 = ssub.s32 1, %s5
  %s8 = scalar_select 0, %s7, %s5
  $region1: #{tpu_custom_call.1} parent=0
    #allocation2 [shape = 'u8[4096]{0}', space=vmem, size = 0x1000, scoped, tag = 'input window, operand 0, single buffered']
    #allocation3 [shape = 's32[1]{0}', space=sflag, size = 0x4, scoped, tag = 'scoped memory for tpu_custom_call.1']
    #allocation4 [shape = 's32[1]{0}', space=sflag, size = 0x4, scoped, tag = 'scoped memory for tpu_custom_call.1']
    #allocation5 [shape = 'u8[8192]{0}', space=vmem, size = 0x2000, scoped, tag = 'input window, operand 1, single buffered']
    #allocation6 [shape = 's32[1]{0}', space=sflag, size = 0x4, scoped, tag = 'scoped memory for tpu_custom_call.1']
    #allocation7 [shape = 'u8[8192]{0}', space=vmem, size = 0x2000, scoped, tag = 'input window, operand 2, single buffered']
    #allocation8 [shape = 'u8[4096]{0}', space=vmem, size = 0x1000, scoped, tag = 'input window, operand 3, single buffered']
    #allocation9 [shape = 's32[1]{0}', space=sflag, size = 0x4, scoped, tag = 'scoped memory for tpu_custom_call.1']
    #allocation10 [shape = 'u8[4096]{0}', space=vmem, size = 0x1000, scoped, tag = 'output window, operand 0, single buffered']
    %9 = vsyncpa [#allocation3], 0
    %10 = vsyncpa [#allocation6], 0
    %11 = vsyncpa [#allocation9], 0
    %12 = vsyncpa [#allocation4], 0
    // Predicated region
    $region2: #{tpu_custom_call.1} parent=1 // pred_check
      _
    $region3: #{tpu_custom_call.1} parent=1 // pred_check_branch
      %14 = sbr.rel (0) target = $region5
    $region4: #{tpu_custom_call.1} parent=1 // pred_region
      %16 = vsyncadd [#allocation3], 0
      %s18 = sshll.u32 %s0, 4
      %s19 = int_to_ptr.hbm [resolvable:$true] %s18
      %s20 = sshll.u32 [#allocation2], 4
      %s21 = int_to_ptr.vmem [resolvable:$true] %s20
      %23 = dma.hbm_to_vmem [thread:$0]  %s19, 128, %s21, [#allocation3]
    $region5: #{tpu_custom_call.1} parent=1 // pred_fallthru
      _
    // Predicated region
    $region6: #{tpu_custom_call.1} parent=1 // pred_check
      _
    $region7: #{tpu_custom_call.1} parent=1 // pred_check_branch
      %25 = sbr.rel (0) target = $region9
    $region8: #{tpu_custom_call.1} parent=1 // pred_region
      %27 = vsyncadd [#allocation6], 0
      %s28 = sshll.u32 %s1, 4
      %s29 = int_to_ptr.hbm [resolvable:$true] %s28
      %s30 = sshll.u32 [#allocation5], 4
      %s31 = int_to_ptr.vmem [resolvable:$true] %s30
      %36 = dma.hbm_to_vmem [thread:$0]  %s29, 256, %s31, [#allocation6], 64, 64, 4
    $region9: #{tpu_custom_call.1} parent=1 // pred_fallthru
      _
    // Predicated region
    $region10: #{tpu_custom_call.1} parent=1 // pred_check
      _
    $region11: #{tpu_custom_call.1} parent=1 // pred_check_branch
      %38 = sbr.rel (0) target = $region13
    $region12: #{tpu_custom_call.1} parent=1 // pred_region
      %40 = vsyncadd [#allocation6], 0
      %s41 = sshll.u32 %s2, 4
      %s42 = int_to_ptr.hbm [resolvable:$true] %s41
      %s43 = sshll.u32 [#allocation7], 4
      %s44 = int_to_ptr.vmem [resolvable:$true] %s43
      %49 = dma.hbm_to_vmem [thread:$0]  %s42, 256, %s44, [#allocation6], 64, 64, 4
    $region13: #{tpu_custom_call.1} parent=1 // pred_fallthru
      _
    // Predicated region
    $region14: #{tpu_custom_call.1} parent=1 // pred_check
      _
    $region15: #{tpu_custom_call.1} parent=1 // pred_check_branch
      %51 = sbr.rel (0) target = $region17
    $region16: #{tpu_custom_call.1} parent=1 // pred_region
      %53 = vsyncadd [#allocation9], 0
      %s55 = sshll.u32 %s3, 4
      %s56 = int_to_ptr.hbm [resolvable:$true] %s55
      %s57 = sshll.u32 [#allocation8], 4
      %s58 = int_to_ptr.vmem [resolvable:$true] %s57
      %60 = dma.hbm_to_vmem [thread:$0]  %s56, 128, %s58, [#allocation9]
    $region17: #{tpu_custom_call.1} parent=1 // pred_fallthru
      _
    // Predicated region
    $region18: #{tpu_custom_call.1} parent=1 // pred_check
      _
    $region19: #{tpu_custom_call.1} parent=1 // pred_check_branch
      %62 = sbr.rel (0) target = $region21
    $region20: #{tpu_custom_call.1} parent=1 // pred_region
      %64 = dma.done [#allocation3], 128
    $region21: #{tpu_custom_call.1} parent=1 // pred_fallthru
      _
    // Predicated region
    $region22: #{tpu_custom_call.1} parent=1 // pred_check
      _
    $region23: #{tpu_custom_call.1} parent=1 // pred_check_branch
      %66 = sbr.rel (0) target = $region25
    $region24: #{tpu_custom_call.1} parent=1 // pred_region
      %68 = dma.done [#allocation6], 256
    $region25: #{tpu_custom_call.1} parent=1 // pred_fallthru
      _
    // Predicated region
    $region26: #{tpu_custom_call.1} parent=1 // pred_check
      _
    $region27: #{tpu_custom_call.1} parent=1 // pred_check_branch
      %70 = sbr.rel (0) target = $region29
    $region28: #{tpu_custom_call.1} parent=1 // pred_region
      %72 = dma.done [#allocation6], 256
    $region29: #{tpu_custom_call.1} parent=1 // pred_fallthru
      _
    // Predicated region
    $region30: #{tpu_custom_call.1} parent=1 // pred_check
      _
    $region31: #{tpu_custom_call.1} parent=1 // pred_check_branch
      %74 = sbr.rel (0) target = $region33
    $region32: #{tpu_custom_call.1} parent=1 // pred_region
      %76 = dma.done [#allocation9], 128
    $region33: #{tpu_custom_call.1} parent=1 // pred_fallthru
      _
    %v78 = vld [vmem:[#allocation2] sm:$0xff]
    %v79 = vld [vmem:[#allocation8] sm:$0xff]
    %v80 = vpack.c.bf16 %v78, %v78
    %v81 = vld [vmem:[#allocation5] sm:$0xf]
    %v82 = vld [vmem:[#allocation5 + $0x4] sm:$0xf]
    %v83 = vld [vmem:[#allocation5 + $0x8] sm:$0xf]
    %v84 = vld [vmem:[#allocation5 + $0xc] sm:$0xf]
    %v85 = vperm.slane %v79, 0
    %v90 = vunpack.c.l.b16 %v81
    %v91 = vunpack.c.l.b16 %v82
    %v92 = vunpack.c.l.b16 %v83
    %v93 = vunpack.c.l.b16 %v84
    %v94 = vpack.c.b16 %v91, %v90
    %v95 = vpack.c.b16 %v93, %v92
    %vm98 = vcmask 261120
    %v100 = vsel %vm98, %v80, 0
    %102 = vmatpush.bf16.msra.mxu0 0
    %103 = vmatpush.bf16.msra.mxu0 0
    %104 = vmatpush.bf16.msra.mxu0 0
    %105 = vmatpush.bf16.msra.mxu0 0
    %106 = vmatpush.bf16.msra.mxu0 0
    %107 = vmatpush.bf16.msra.mxu0 0
    %108 = vmatpush.bf16.msra.mxu0 %v95
    %109 = vmatpush.bf16.msra.mxu0 %v94
    %110 = vmatmul.bf16.gmra.mxu0 %v100
    %v111 = vpop.f32.mrf.mxu0
    %v112 = vadd.f32 %v85, %v111
    %v113 = vpop.f32.mrf.mxu0
    %114 = vdwg.mxu0
    %v115 = vsel %vm98, %v112, 0.0
    %v116 = vrot.slane %v115, 4
    %v117 = vadd.f32 %v115, %v116
    %v118 = vrot.slane %v117, 2
    %v119 = vadd.f32 %v117, %v118
    %v120 = vrot.slane %v119, 1
    %v121 = vadd.f32 %v119, %v120
    %v122 = vrcp.pop 8.0
    %v123 = vmul.f32 8.0, %v122
    %v124 = vsub.f32 1.0, %v123
    %v125 = vmul.f32 %v122, %v124
    %v126 = vadd.f32 %v122, %v125
    %vm127 = vweird.f32 %v122
    %v128 = vsel %vm127, %v122, %v126
    %v129 = vmul.f32 %v121, %v128
    %v130 = vsub.f32 %v112, %v129
    %v131 = vmul.f32 %v130, %v130
    %v132 = vsel %vm98, %v131, 0.0
    %v133 = vrot.slane %v132, 4
    %v134 = vadd.f32 %v132, %v133
    %v135 = vrot.slane %v134, 2
    %v136 = vadd.f32 %v134, %v135
    %v137 = vrot.slane %v136, 1
    %v138 = vadd.f32 %v136, %v137
    %v139 = vmul.f32 %v138, %v128
    %v140 = vadd.f32 %v139, 1e-05
    %v141 = vrsqrt.pop %v140
    %v142 = vmul.f32 %v141, %v140
    %v143 = vmul.f32 %v142, %v141
    %v144 = vmul.f32 0.5, %v143
    %v145 = vsub.f32 1.5, %v144
    %v146 = vmul.f32 %v141, %v145
    %vm147 = vweird.f32 %v140
    %vm148 = vweird.f32 %v141
    %vm149 = vmor %vm147, %vm148
    %v150 = vsel %vm149, %v141, %v146
    %v151 = vmul.f32 %v79, %v150
    %v152 = vperm.slane %v151, 1
    %v153 = vmul.f32 %v130, %v152
    %v154 = vperm.slane %v79, 2
    %v155 = vadd.f32 %v153, %v154
    %v156 = vmax.f32 %v155, 0.0
    %v157 = vmin.f32 %v155, 0.0
    %v158 = vperm.slane %v79, 6
    %v159 = vmul.f32 %v158, %v157
    %v160 = vadd.f32 %v156, %v159
    %v161 = vpack.c.bf16 %v160, %v160
    %v162 = vld [vmem:[#allocation7] sm:$0xf]
    %v163 = vld [vmem:[#allocation7 + $0x4] sm:$0xf]
    %v164 = vld [vmem:[#allocation7 + $0x8] sm:$0xf]
    %v165 = vld [vmem:[#allocation7 + $0xc] sm:$0xf]
    %v166 = vperm.slane %v79, 3
    %v171 = vunpack.c.l.b16 %v162
    %v172 = vunpack.c.l.b16 %v163
    %v173 = vunpack.c.l.b16 %v164
    %v174 = vunpack.c.l.b16 %v165
    %v175 = vpack.c.b16 %v172, %v171
    %v176 = vpack.c.b16 %v174, %v173
    %v180 = vsel %vm98, %v161, 0
    %182 = vmatpush.bf16.msra.mxu0 0
    %183 = vmatpush.bf16.msra.mxu0 0
    %184 = vmatpush.bf16.msra.mxu0 0
    %185 = vmatpush.bf16.msra.mxu0 0
    %186 = vmatpush.bf16.msra.mxu0 0
    %187 = vmatpush.bf16.msra.mxu0 0
    %188 = vmatpush.bf16.msra.mxu0 %v176
    %189 = vmatpush.bf16.msra.mxu0 %v175
    %190 = vmatmul.bf16.gmra.mxu0 %v180
    %v191 = vpop.f32.mrf.mxu0
    %v192 = vadd.f32 %v166, %v191
    %v193 = vpop.f32.mrf.mxu0
    %194 = vdwg.mxu0
    %v195 = vsel %vm98, %v192, 0.0
    %v196 = vrot.slane %v195, 4
    %v197 = vadd.f32 %v195, %v196
    %v198 = vrot.slane %v197, 2
    %v199 = vadd.f32 %v197, %v198
    %v200 = vrot.slane %v199, 1
    %v201 = vadd.f32 %v199, %v200
    %v202 = vmul.f32 %v201, %v128
    %v203 = vsub.f32 %v192, %v202
    %v204 = vmul.f32 %v203, %v203
    %v205 = vsel %vm98, %v204, 0.0
    %v206 = vrot.slane %v205, 4
    %v207 = vadd.f32 %v205, %v206
    %v208 = vrot.slane %v207, 2
    %v209 = vadd.f32 %v207, %v208
    %v210 = vrot.slane %v209, 1
    %v211 = vadd.f32 %v209, %v210
    %v212 = vmul.f32 %v211, %v128
    %v213 = vadd.f32 %v212, 1e-05
    %v214 = vrsqrt.pop %v213
    %v215 = vmul.f32 %v214, %v213
    %v216 = vmul.f32 %v215, %v214
    %v217 = vmul.f32 0.5, %v216
    %v218 = vsub.f32 1.5, %v217
    %v219 = vmul.f32 %v214, %v218
    %vm220 = vweird.f32 %v213
    %vm221 = vweird.f32 %v214
    %vm222 = vmor %vm220, %vm221
    %v223 = vsel %vm222, %v214, %v219
    %v224 = vmul.f32 %v79, %v223
    %v225 = vperm.slane %v224, 4
    %v226 = vmul.f32 %v203, %v225
    %v227 = vperm.slane %v79, 5
    %v228 = vadd.f32 %v226, %v227
    %v229 = vmax.f32 %v228, 0.0
    %v230 = vmin.f32 %v228, 0.0
    %v231 = vperm.slane %v79, 7
    %v232 = vmul.f32 %v231, %v230
    %v233 = vadd.f32 %v229, %v232
    %v234 = vadd.f32 %v78, %v233
    %235 = vst.msk [vmem:[#allocation10] sm:$0xff] %vm98, %v234
    // Predicated region
    $region34: #{tpu_custom_call.1} parent=1 // pred_check
      _
    $region35: #{tpu_custom_call.1} parent=1 // pred_check_branch
      %237 = sbr.rel (0) target = $region37
    $region36: #{tpu_custom_call.1} parent=1 // pred_region
      %239 = vsyncadd [#allocation4], 0
      %s241 = sshll.u32 [#allocation10], 4
      %s242 = int_to_ptr.vmem [resolvable:$true] %s241
      %s243 = sshll.u32 %s4, 4
      %s244 = int_to_ptr.hbm [resolvable:$true] %s243
      %246 = dma.vmem_to_hbm [thread:$0]  %s242, 128, %s244, [#allocation4]
    $region37: #{tpu_custom_call.1} parent=1 // pred_fallthru
      _
    // Predicated region
    $region38: #{tpu_custom_call.1} parent=1 // pred_check
      _
    $region39: #{tpu_custom_call.1} parent=1 // pred_check_branch
      %248 = sbr.rel (0) target = $region41
    $region40: #{tpu_custom_call.1} parent=1 // pred_region
      %250 = dma.done [#allocation4], 128
    $region41: #{tpu_custom_call.1} parent=1 // pred_fallthru
      _
    %251 = vsyncpa [#allocation3], 1
    %252 = vsyncpa [#allocation6], 1
    %253 = vsyncpa [#allocation9], 1
    %254 = vsyncpa [#allocation4], 1

</llo_original>
